<compile_context>
chip_gen: v5e
topology: v5e:2x2
jax: 0.10.0
libtpu: 0.0.40
codegen_flags: <defaults>
</compile_context>

<pallas_src>
import functools

import jax
import jax.numpy as jnp
from jax import lax
from jax.experimental import pallas as pl
from jax.experimental.pallas import tpu as pltpu


def _distortion_tile_kernel(map_i_ref, map_j_ref, sq_i_ref, sq_j_ref, d_ref,
                            out_ref, *, n):
    i = pl.program_id(0)
    j = pl.program_id(1)
    tm, tn = d_ref.shape

    m_i = map_i_ref[...].astype(jnp.float32)        # (TM, E)
    m_j = map_j_ref[...].astype(jnp.float32)        # (TN, E)

    # Gram block on the MXU; contract the embedding dim of both operands
    # directly (no explicit transpose of the RHS).
    gram = lax.dot_general(
        m_i, m_j,
        dimension_numbers=(((1,), (1,)), ((), ())),
        preferred_element_type=jnp.float32)          # (TM, TN)

    sq_i = sq_i_ref[...].astype(jnp.float32)         # (TM, 1)
    sq_j = sq_j_ref[...].astype(jnp.float32)         # (1, TN)
    d2 = sq_i + sq_j - 2.0 * gram                    # ||x_i - x_j||^2

    # Global element indices for this tile: identity on the true diagonal,
    # plus masking of padded rows/cols on edge tiles.
    row_g = i * tm + lax.broadcasted_iota(jnp.int32, (tm, tn), 0)
    col_g = j * tn + lax.broadcasted_iota(jnp.int32, (tm, tn), 1)
    diag = row_g == col_g
    valid = (row_g < n) & (col_g < n)

    # Clamp negatives, force the diagonal distance to exactly zero (as in the
    # reference) and zero out any padded positions before the sqrt.
    d2 = jnp.where(diag | jnp.logical_not(valid), 0.0, jnp.maximum(d2, 0.0))
    d = jnp.sqrt(d2)                                 # one EUP sqrt / element

    d_tgt = jnp.where(valid, d_ref[...].astype(jnp.float32), 0.0)
    denom = jnp.where(valid, d_tgt + diag.astype(jnp.float32), 1.0)  # D + I
    inv = pl.reciprocal(denom)                       # exact, one EUP op / element
    inv2 = inv * inv

    # Per-tile partial sums of the single-pass decomposition.
    s1 = jnp.sum(d * inv)                            # sum d / denom
    s2 = jnp.sum(d2 * inv2)                          # sum d^2 / denom^2 (sqrt-free)
    s3 = jnp.sum(d * d_tgt * inv2)                   # sum d * D / denom^2
    s4 = jnp.sum(d_tgt * d_tgt * inv2)               # sum D^2 / denom^2

    # Pack the four scalars into the first 4 lanes of a resident (1,8,128)
    # output block and accumulate across the j (column-tile) axis.
    sub = lax.broadcasted_iota(jnp.int32, (1, 8, 128), 1)
    lane = lax.broadcasted_iota(jnp.int32, (1, 8, 128), 2)
    partial = jnp.zeros((1, 8, 128), jnp.float32)
    partial = jnp.where((sub == 0) & (lane == 0), s1, partial)
    partial = jnp.where((sub == 0) & (lane == 1), s2, partial)
    partial = jnp.where((sub == 0) & (lane == 2), s3, partial)
    partial = jnp.where((sub == 0) & (lane == 3), s4, partial)

    @pl.when(j == 0)
    def _():
        out_ref[...] = partial

    @pl.when(j > 0)
    def _():
        out_ref[...] = out_ref[...] + partial


def distortion_loss(mapping, d_target, *, tile_m=512, tile_n=512):
    """mapping: (N, E) f32, d_target: (N, N) f32 -> scalar f32 distortion loss.

    tile_m must be a multiple of 8 and tile_n a multiple of 128 whenever they
    are smaller than N (the defaults satisfy this).
    """
    n, e = mapping.shape
    assert d_target.shape == (n, n)
    mapping = mapping.astype(jnp.float32)
    d_target = d_target.astype(jnp.float32)

    tm = min(tile_m, n)
    tn = min(tile_n, n)
    gi = pl.cdiv(n, tm)
    gj = pl.cdiv(n, tn)

    # Precompute the row norms once; j-side copy is lane-major (1, N).
    sq_row = jnp.sum(mapping * mapping, axis=-1, keepdims=True)   # (N, 1)
    sq_col = sq_row.T                                             # (1, N)

    kernel = functools.partial(_distortion_tile_kernel, n=n)

    partials = pl.pallas_call(
        kernel,
        out_shape=jax.ShapeDtypeStruct((gi, 8, 128), jnp.float32),
        grid_spec=pltpu.PrefetchScalarGridSpec(
            num_scalar_prefetch=0,
            grid=(gi, gj),
            in_specs=[
                pl.BlockSpec((tm, e), lambda i, j: (i, 0)),   # row mapping block
                pl.BlockSpec((tn, e), lambda i, j: (j, 0)),   # col mapping block
                pl.BlockSpec((tm, 1), lambda i, j: (i, 0)),   # row norms
                pl.BlockSpec((1, tn), lambda i, j: (0, j)),   # col norms (lane-major)
                pl.BlockSpec((tm, tn), lambda i, j: (i, j)),  # D tile
            ],
            out_specs=pl.BlockSpec((1, 8, 128), lambda i, j: (i, 0, 0)),
        ),
        compiler_params=pltpu.CompilerParams(
            dimension_semantics=("parallel", "arbitrary")),
    )(mapping, mapping, sq_row, sq_col, d_target)

    # Tiny final combine: sum per-row-tile partials, then exact scalar divides.
    s = jnp.sum(partials[:, 0, :4], axis=0)                       # (4,)
    s1, s2, s3, s4 = s[0], s[1], s[2], s[3]
    scaling = s1 / s2
    loss = (scaling * scaling * s2 - 2.0 * scaling * s3 + s4) / float(n * n - n)
    return loss


# ----------------------- pure-JAX reference (for checking) -----------------------
def _pairwise_euclid_ref(x):
    diff = x[:, None, :] - x[None, :, :]
    return jnp.sqrt(jnp.maximum(jnp.sum(diff * diff, axis=-1), 0.0))


def _distortion_ref(mapping, d_target):
    n = d_target.shape[0]
    d = _pairwise_euclid_ref(mapping)
    denom = d_target + jnp.eye(n, dtype=jnp.float32)
    a = d / denom
    scaling = a.sum() / (a * a).sum()
    val = (scaling * d - d_target) ** 2 / (denom * denom)
    return val.sum() / float(n * n - n)


def _check_close(got, want, rtol=5e-3, atol=1e-4):
    got = float(got)
    want = float(want)
    assert abs(got - want) <= atol + rtol * abs(want), (got, want)


if __name__ == "__main__":
    key = jax.random.PRNGKey(0)
    k1, k2, k3, k4 = jax.random.split(key, 4)

    # Case 1: small single-tile case (N=8 prototypes, E=32 embedding dim).
    N1, E1 = 8, 32
    protos1 = jax.random.normal(k1, (N1, E1), dtype=jnp.float32)
    D1 = _pairwise_euclid_ref(protos1)
    mapping1 = jax.random.normal(k2, (N1, E1), dtype=jnp.float32)
    loss1 = distortion_loss(mapping1, D1)
    jax.block_until_ready(loss1)
    _check_close(loss1, _distortion_ref(mapping1, D1))

    # Case 2: multi-tile case exercising the (parallel row-tile x accumulated
    # column-tile) grid and the edge-tile masking (N=160 not a tile multiple).
    N2, E2 = 160, 32
    protos2 = jax.random.normal(k3, (N2, E2), dtype=jnp.float32)
    D2 = _pairwise_euclid_ref(protos2)
    mapping2 = jax.random.normal(k4, (N2, E2), dtype=jnp.float32)
    loss2 = distortion_loss(mapping2, D2, tile_m=64, tile_n=128)
    jax.block_until_ready(loss2)
    _check_close(loss2, _distortion_ref(mapping2, D2))

    print("KERNEL_OK")
</pallas_src>

<mosaic_0001>
module attributes {stable_mosaic.version = 11 : i64} {
  func.func @_distortion_tile_kernel(%arg0: i32, %arg1: i32, %arg2: memref<8x32xf32, #tpu.memory_space<vmem>>, %arg3: memref<8x32xf32, #tpu.memory_space<vmem>>, %arg4: memref<8x1xf32, #tpu.memory_space<vmem>>, %arg5: memref<1x8xf32, #tpu.memory_space<vmem>>, %arg6: memref<8x8xf32, #tpu.memory_space<vmem>>, %arg7: memref<1x8x128xf32, #tpu.memory_space<vmem>>) attributes {dimension_semantics = [#tpu.dimension_semantics<parallel>, #tpu.dimension_semantics<arbitrary>], iteration_bounds = array<i64: 1, 1>, scalar_prefetch = 0 : i64, scratch_operands = 0 : i64, tpu.core_type = #tpu.core_type<tc>, window_params = [{transform_indices = @transform_0, window_bounds = array<i64: 8, 32>}, {transform_indices = @transform_1, window_bounds = array<i64: 8, 32>}, {transform_indices = @transform_2, window_bounds = array<i64: 8, 1>}, {transform_indices = @transform_3, window_bounds = array<i64: 1, 8>}, {transform_indices = @transform_4, window_bounds = array<i64: 8, 8>}, {transform_indices = @transform_5, window_bounds = array<i64: 1, 8, 128>}]} {
    %c0 = arith.constant 0 : index
    %c0_0 = arith.constant 0 : index
    %0 = vector.load %arg2[%c0, %c0_0] : memref<8x32xf32, #tpu.memory_space<vmem>>, vector<8x32xf32>
    %c0_1 = arith.constant 0 : index
    %c0_2 = arith.constant 0 : index
    %1 = vector.load %arg3[%c0_1, %c0_2] : memref<8x32xf32, #tpu.memory_space<vmem>>, vector<8x32xf32>
    %cst = arith.constant dense<0.000000e+00> : vector<8x8xf32>
    %2 = tpu.matmul %0, %1, %cst {dimension_numbers = #tpu.dot_dimension_numbers<[1], [1], [0], [0], [0, 0, 1, 0], [], []>} : vector<8x32xf32>, vector<8x32xf32>, vector<8x8xf32> -> vector<8x8xf32>
    %c0_3 = arith.constant 0 : index
    %c0_4 = arith.constant 0 : index
    %3 = vector.load %arg4[%c0_3, %c0_4] : memref<8x1xf32, #tpu.memory_space<vmem>>, vector<8x1xf32>
    %c0_5 = arith.constant 0 : index
    %c0_6 = arith.constant 0 : index
    %4 = vector.load %arg5[%c0_5, %c0_6] : memref<1x8xf32, #tpu.memory_space<vmem>>, vector<1x8xf32>
    %5 = vector.broadcast %3 : vector<8x1xf32> to vector<8x8xf32>
    %6 = vector.broadcast %4 : vector<1x8xf32> to vector<8x8xf32>
    %7 = arith.addf %5, %6 : vector<8x8xf32>
    %cst_7 = arith.constant 2.000000e+00 : f32
    %8 = vector.broadcast %cst_7 : f32 to vector<8x8xf32>
    %9 = arith.mulf %8, %2 : vector<8x8xf32>
    %10 = arith.subf %7, %9 : vector<8x8xf32>
    %c8_i32 = arith.constant 8 : i32
    %11 = arith.muli %arg0, %c8_i32 : i32
    %12 = tpu.iota {dimensions = array<i32: 0>} : vector<8x8xi32>
    %13 = vector.broadcast %11 : i32 to vector<8x8xi32>
    %14 = arith.addi %13, %12 : vector<8x8xi32>
    %c8_i32_8 = arith.constant 8 : i32
    %15 = arith.muli %arg1, %c8_i32_8 : i32
    %16 = tpu.iota {dimensions = array<i32: 1>} : vector<8x8xi32>
    %17 = vector.broadcast %15 : i32 to vector<8x8xi32>
    %18 = arith.addi %17, %16 : vector<8x8xi32>
    %19 = arith.cmpi eq, %14, %18 : vector<8x8xi32>
    %c8_i32_9 = arith.constant 8 : i32
    %20 = vector.broadcast %c8_i32_9 : i32 to vector<8x8xi32>
    %21 = arith.cmpi slt, %14, %20 : vector<8x8xi32>
    %c8_i32_10 = arith.constant 8 : i32
    %22 = vector.broadcast %c8_i32_10 : i32 to vector<8x8xi32>
    %23 = arith.cmpi slt, %18, %22 : vector<8x8xi32>
    %24 = arith.andi %21, %23 : vector<8x8xi1>
    %cst_11 = arith.constant dense<true> : vector<8x8xi1>
    %25 = arith.xori %24, %cst_11 : vector<8x8xi1>
    %26 = arith.ori %19, %25 : vector<8x8xi1>
    %cst_12 = arith.constant 0.000000e+00 : f32
    %27 = vector.broadcast %cst_12 : f32 to vector<8x8xf32>
    %28 = arith.maximumf %10, %27 : vector<8x8xf32>
    %cst_13 = arith.constant 0.000000e+00 : f32
    %29 = vector.broadcast %cst_13 : f32 to vector<8x8xf32>
    %30 = arith.select %26, %29, %28 : vector<8x8xi1>, vector<8x8xf32>
    %31 = math.sqrt %30 : vector<8x8xf32>
    %c0_14 = arith.constant 0 : index
    %c0_15 = arith.constant 0 : index
    %32 = vector.load %arg6[%c0_14, %c0_15] : memref<8x8xf32, #tpu.memory_space<vmem>>, vector<8x8xf32>
    %cst_16 = arith.constant 0.000000e+00 : f32
    %33 = vector.broadcast %cst_16 : f32 to vector<8x8xf32>
    %34 = arith.select %24, %32, %33 : vector<8x8xi1>, vector<8x8xf32>
    %35 = arith.extui %19 : vector<8x8xi1> to vector<8x8xi32>
    %36 = arith.sitofp %35 : vector<8x8xi32> to vector<8x8xf32>
    %37 = arith.addf %34, %36 : vector<8x8xf32>
    %cst_17 = arith.constant 1.000000e+00 : f32
    %38 = vector.broadcast %cst_17 : f32 to vector<8x8xf32>
    %39 = arith.select %24, %37, %38 : vector<8x8xi1>, vector<8x8xf32>
    %40 = tpu.reciprocal %39 : vector<8x8xf32> -> vector<8x8xf32>
    %41 = arith.mulf %40, %40 : vector<8x8xf32>
    %42 = arith.mulf %31, %40 : vector<8x8xf32>
    %43 = vector.shape_cast %42 : vector<8x8xf32> to vector<1x8x8xf32>
    %cst_18 = arith.constant dense<0.000000e+00> : vector<1xf32>
    %44 = vector.multi_reduction <add>, %43, %cst_18 [1, 2] : vector<1x8x8xf32> to vector<1xf32>
    %45 = vector.shape_cast %44 : vector<1xf32> to vector<1x1x1xf32>
    %46 = vector.extract %45[0, 0, 0] : f32 from vector<1x1x1xf32>
    %47 = arith.mulf %30, %41 : vector<8x8xf32>
    %48 = vector.shape_cast %47 : vector<8x8xf32> to vector<1x8x8xf32>
    %cst_19 = arith.constant dense<0.000000e+00> : vector<1xf32>
    %49 = vector.multi_reduction <add>, %48, %cst_19 [1, 2] : vector<1x8x8xf32> to vector<1xf32>
    %50 = vector.shape_cast %49 : vector<1xf32> to vector<1x1x1xf32>
    %51 = vector.extract %50[0, 0, 0] : f32 from vector<1x1x1xf32>
    %52 = arith.mulf %31, %34 : vector<8x8xf32>
    %53 = arith.mulf %52, %41 : vector<8x8xf32>
    %54 = vector.shape_cast %53 : vector<8x8xf32> to vector<1x8x8xf32>
    %cst_20 = arith.constant dense<0.000000e+00> : vector<1xf32>
    %55 = vector.multi_reduction <add>, %54, %cst_20 [1, 2] : vector<1x8x8xf32> to vector<1xf32>
    %56 = vector.shape_cast %55 : vector<1xf32> to vector<1x1x1xf32>
    %57 = vector.extract %56[0, 0, 0] : f32 from vector<1x1x1xf32>
    %58 = arith.mulf %34, %34 : vector<8x8xf32>
    %59 = arith.mulf %58, %41 : vector<8x8xf32>
    %60 = vector.shape_cast %59 : vector<8x8xf32> to vector<1x8x8xf32>
    %cst_21 = arith.constant dense<0.000000e+00> : vector<1xf32>
    %61 = vector.multi_reduction <add>, %60, %cst_21 [1, 2] : vector<1x8x8xf32> to vector<1xf32>
    %62 = vector.shape_cast %61 : vector<1xf32> to vector<1x1x1xf32>
    %63 = vector.extract %62[0, 0, 0] : f32 from vector<1x1x1xf32>
    %64 = tpu.iota {dimensions = array<i32: 1>} : vector<1x8x128xi32>
    %65 = tpu.iota {dimensions = array<i32: 2>} : vector<1x8x128xi32>
    %cst_22 = arith.constant 0.000000e+00 : f32
    %66 = vector.broadcast %cst_22 : f32 to vector<1x8x128xf32>
    %c0_i32 = arith.constant 0 : i32
    %67 = vector.broadcast %c0_i32 : i32 to vector<1x8x128xi32>
    %68 = arith.cmpi eq, %64, %67 : vector<1x8x128xi32>
    %c0_i32_23 = arith.constant 0 : i32
    %69 = vector.broadcast %c0_i32_23 : i32 to vector<1x8x128xi32>
    %70 = arith.cmpi eq, %65, %69 : vector<1x8x128xi32>
    %71 = arith.andi %68, %70 : vector<1x8x128xi1>
    %72 = vector.broadcast %46 : f32 to vector<1x8x128xf32>
    %73 = arith.select %71, %72, %66 : vector<1x8x128xi1>, vector<1x8x128xf32>
    %c0_i32_24 = arith.constant 0 : i32
    %74 = vector.broadcast %c0_i32_24 : i32 to vector<1x8x128xi32>
    %75 = arith.cmpi eq, %64, %74 : vector<1x8x128xi32>
    %c1_i32 = arith.constant 1 : i32
    %76 = vector.broadcast %c1_i32 : i32 to vector<1x8x128xi32>
    %77 = arith.cmpi eq, %65, %76 : vector<1x8x128xi32>
    %78 = arith.andi %75, %77 : vector<1x8x128xi1>
    %79 = vector.broadcast %51 : f32 to vector<1x8x128xf32>
    %80 = arith.select %78, %79, %73 : vector<1x8x128xi1>, vector<1x8x128xf32>
    %c0_i32_25 = arith.constant 0 : i32
    %81 = vector.broadcast %c0_i32_25 : i32 to vector<1x8x128xi32>
    %82 = arith.cmpi eq, %64, %81 : vector<1x8x128xi32>
    %c2_i32 = arith.constant 2 : i32
    %83 = vector.broadcast %c2_i32 : i32 to vector<1x8x128xi32>
    %84 = arith.cmpi eq, %65, %83 : vector<1x8x128xi32>
    %85 = arith.andi %82, %84 : vector<1x8x128xi1>
    %86 = vector.broadcast %57 : f32 to vector<1x8x128xf32>
    %87 = arith.select %85, %86, %80 : vector<1x8x128xi1>, vector<1x8x128xf32>
    %c0_i32_26 = arith.constant 0 : i32
    %88 = vector.broadcast %c0_i32_26 : i32 to vector<1x8x128xi32>
    %89 = arith.cmpi eq, %64, %88 : vector<1x8x128xi32>
    %c3_i32 = arith.constant 3 : i32
    %90 = vector.broadcast %c3_i32 : i32 to vector<1x8x128xi32>
    %91 = arith.cmpi eq, %65, %90 : vector<1x8x128xi32>
    %92 = arith.andi %89, %91 : vector<1x8x128xi1>
    %93 = vector.broadcast %63 : f32 to vector<1x8x128xf32>
    %94 = arith.select %92, %93, %87 : vector<1x8x128xi1>, vector<1x8x128xf32>
    %c0_i32_27 = arith.constant 0 : i32
    %95 = arith.cmpi eq, %arg1, %c0_i32_27 : i32
    %96 = arith.extui %95 : i1 to i32
    %c0_i32_28 = arith.constant 0 : i32
    %97 = arith.cmpi ne, %96, %c0_i32_28 : i32
    scf.if %97 {
      %c0_31 = arith.constant 0 : index
      %c0_32 = arith.constant 0 : index
      %c0_33 = arith.constant 0 : index
      %101 = vector.load %arg7[%c0_31, %c0_32, %c0_33] : memref<1x8x128xf32, #tpu.memory_space<vmem>>, vector<1x8x128xf32>
      tpu.vector_store %arg7[%c0_31, %c0_32, %c0_33], %94 {strides = array<i32>} : memref<1x8x128xf32, #tpu.memory_space<vmem>>, vector<1x8x128xf32>,
    } else {
    }
    %c0_i32_29 = arith.constant 0 : i32
    %98 = arith.cmpi sgt, %arg1, %c0_i32_29 : i32
    %99 = arith.extui %98 : i1 to i32
    %c0_i32_30 = arith.constant 0 : i32
    %100 = arith.cmpi ne, %99, %c0_i32_30 : i32
    scf.if %100 {
      %c0_31 = arith.constant 0 : index
      %c0_32 = arith.constant 0 : index
      %c0_33 = arith.constant 0 : index
      %101 = vector.load %arg7[%c0_31, %c0_32, %c0_33] : memref<1x8x128xf32, #tpu.memory_space<vmem>>, vector<1x8x128xf32>
      %102 = arith.addf %101, %94 : vector<1x8x128xf32>
      %c0_34 = arith.constant 0 : index
      %c0_35 = arith.constant 0 : index
      %c0_36 = arith.constant 0 : index
      %103 = vector.load %arg7[%c0_34, %c0_35, %c0_36] : memref<1x8x128xf32, #tpu.memory_space<vmem>>, vector<1x8x128xf32>
      tpu.vector_store %arg7[%c0_34, %c0_35, %c0_36], %102 {strides = array<i32>} : memref<1x8x128xf32, #tpu.memory_space<vmem>>, vector<1x8x128xf32>,
    } else {
    }
    return
  }
  func.func @transform_0(%arg0: i32, %arg1: i32) -> (i32, i32) {
    %c0_i32 = arith.constant 0 : i32
    %c0_i32_0 = arith.constant 0 : i32
    return %arg0, %c0_i32 : i32, i32
  }
  func.func @transform_1(%arg0: i32, %arg1: i32) -> (i32, i32) {
    %c0_i32 = arith.constant 0 : i32
    %c0_i32_0 = arith.constant 0 : i32
    return %arg1, %c0_i32 : i32, i32
  }
  func.func @transform_2(%arg0: i32, %arg1: i32) -> (i32, i32) {
    %c0_i32 = arith.constant 0 : i32
    %c0_i32_0 = arith.constant 0 : i32
    return %arg0, %c0_i32 : i32, i32
  }
  func.func @transform_3(%arg0: i32, %arg1: i32) -> (i32, i32) {
    %c0_i32 = arith.constant 0 : i32
    %c0_i32_0 = arith.constant 0 : i32
    return %c0_i32, %arg1 : i32, i32
  }
  func.func @transform_4(%arg0: i32, %arg1: i32) -> (i32, i32) {
    %c0_i32 = arith.constant 0 : i32
    return %arg0, %arg1 : i32, i32
  }
  func.func @transform_5(%arg0: i32, %arg1: i32) -> (i32, i32, i32) {
    %c0_i32 = arith.constant 0 : i32
    %c0_i32_0 = arith.constant 0 : i32
    %c0_i32_1 = arith.constant 0 : i32
    return %arg0, %c0_i32, %c0_i32_0 : i32, i32, i32
  }
}

</mosaic_0001>

<llo_original>
// kernel: tpu_custom_call.1
$region0: #{tpu_custom_call.1}
  #allocation0 [shape = 'u32[]', space=smem, size = 0x4, offset = 0x4, fixed_abs, tag = 'smem constant byte address 0x4 - core index']
  #allocation1 [shape = 'u32[72,128]{1,0:T(1,128)}', space=vmem, size = 0x9000, scoped, tag = 'internal scratch']
  %s0 = inlined_call_operand.vmem [shape: f32[8,32], index: 0, kind: input, shape index: {}]
  %s1 = inlined_call_operand.hbm [shape: f32[8,32], index: 1, kind: input, shape index: {}]
  %s2 = inlined_call_operand.vmem [shape: f32[8,1], index: 2, kind: input, shape index: {}]
  %s3 = inlined_call_operand.vmem [shape: f32[1,8], index: 3, kind: input, shape index: {}]
  %s4 = inlined_call_operand.hbm [shape: f32[8,8], index: 4, kind: input, shape index: {}]
  %s5 = inlined_call_operand.hbm [shape: f32[1,8,128], index: 5, kind: output, shape index: {}]
  %s6 = sld [smem:[#allocation0]]
  $region46: #{tpu_custom_call.1} parent=0
    _
  %s8 = ssub.s32 1, %s6
  %s9 = scalar_select 0, %s8, %s6
  $region1: #{tpu_custom_call.1} parent=0
    #allocation2 [shape = 'u8[4096]{0}', space=vmem, size = 0x1000, scoped, tag = 'input window, operand 1, single buffered']
    #allocation3 [shape = 's32[1]{0}', space=sflag, size = 0x4, scoped, tag = 'scoped memory for tpu_custom_call.1']
    #allocation4 [shape = 's32[1]{0}', space=sflag, size = 0x4, scoped, tag = 'scoped memory for tpu_custom_call.1']
    #allocation5 [shape = 'u8[4096]{0}', space=vmem, size = 0x1000, scoped, tag = 'input window, operand 4, single buffered']
    #allocation6 [shape = 's32[1]{0}', space=sflag, size = 0x4, scoped, tag = 'scoped memory for tpu_custom_call.1']
    #allocation7 [shape = 'u8[4096]{0}', space=vmem, size = 0x1000, scoped, tag = 'output window, operand 0, single buffered']
    %10 = vsyncpa [#allocation3], 0
    %11 = vsyncpa [#allocation6], 0
    %12 = vsyncpa [#allocation4], 0
    // Predicated region
    $region2: #{tpu_custom_call.1} parent=1 // pred_check
      _
    $region3: #{tpu_custom_call.1} parent=1 // pred_check_branch
      %14 = sbr.rel (0) target = $region5
    $region4: #{tpu_custom_call.1} parent=1 // pred_region
      _
    $region5: #{tpu_custom_call.1} parent=1 // pred_fallthru
      _
    // Predicated region
    $region6: #{tpu_custom_call.1} parent=1 // pred_check
      _
    $region7: #{tpu_custom_call.1} parent=1 // pred_check_branch
      %16 = sbr.rel (0) target = $region9
    $region8: #{tpu_custom_call.1} parent=1 // pred_region
      %18 = vsyncadd [#allocation3], 0
      %s20 = sshll.u32 %s1, 4
      %s21 = int_to_ptr.hbm [resolvable:$true] %s20
      %s22 = sshll.u32 [#allocation2], 4
      %s23 = int_to_ptr.vmem [resolvable:$true] %s22
      %25 = dma.hbm_to_vmem [thread:$0]  %s21, 128, %s23, [#allocation3]
    $region9: #{tpu_custom_call.1} parent=1 // pred_fallthru
      _
    // Predicated region
    $region10: #{tpu_custom_call.1} parent=1 // pred_check
      _
    $region11: #{tpu_custom_call.1} parent=1 // pred_check_branch
      %27 = sbr.rel (0) target = $region13
    $region12: #{tpu_custom_call.1} parent=1 // pred_region
      _
    $region13: #{tpu_custom_call.1} parent=1 // pred_fallthru
      _
    // Predicated region
    $region14: #{tpu_custom_call.1} parent=1 // pred_check
      _
    $region15: #{tpu_custom_call.1} parent=1 // pred_check_branch
      %29 = sbr.rel (0) target = $region17
    $region16: #{tpu_custom_call.1} parent=1 // pred_region
      _
    $region17: #{tpu_custom_call.1} parent=1 // pred_fallthru
      _
    // Predicated region
    $region18: #{tpu_custom_call.1} parent=1 // pred_check
      _
    $region19: #{tpu_custom_call.1} parent=1 // pred_check_branch
      %31 = sbr.rel (0) target = $region21
    $region20: #{tpu_custom_call.1} parent=1 // pred_region
      %33 = vsyncadd [#allocation6], 0
      %s35 = sshll.u32 %s4, 4
      %s36 = int_to_ptr.hbm [resolvable:$true] %s35
      %s37 = sshll.u32 [#allocation5], 4
      %s38 = int_to_ptr.vmem [resolvable:$true] %s37
      %40 = dma.hbm_to_vmem [thread:$0]  %s36, 128, %s38, [#allocation6]
    $region21: #{tpu_custom_call.1} parent=1 // pred_fallthru
      _
    // Predicated region
    $region22: #{tpu_custom_call.1} parent=1 // pred_check
      _
    $region23: #{tpu_custom_call.1} parent=1 // pred_check_branch
      %42 = sbr.rel (0) target = $region25
    $region24: #{tpu_custom_call.1} parent=1 // pred_region
      %44 = dma.done [#allocation3], 128
    $region25: #{tpu_custom_call.1} parent=1 // pred_fallthru
      _
    // Predicated region
    $region26: #{tpu_custom_call.1} parent=1 // pred_check
      _
    $region27: #{tpu_custom_call.1} parent=1 // pred_check_branch
      %46 = sbr.rel (0) target = $region29
    $region28: #{tpu_custom_call.1} parent=1 // pred_region
      %48 = dma.done [#allocation6], 128
    $region29: #{tpu_custom_call.1} parent=1 // pred_fallthru
      _
    %v49 = vld [vmem:[%s0] sm:$0xff]
    %v50 = vld [vmem:[#allocation2] sm:$0xff]
    %vm51 = vcmask 261120
    %v53 = vsel %vm51, %v49, 0
    %v56 = vsel %vm51, %v50, 0
    %58 = vmatpush.xpose.msra.mxu0 0.0
    %59 = vmatpush.xpose.msra.mxu0 0.0
    %60 = vmatpush.xpose.msra.mxu0 0.0
    %61 = vmatpush.xpose.msra.mxu0 0.0
    %62 = vmatpush.xpose.msra.mxu0 0.0
    %63 = vmatpush.xpose.msra.mxu0 0.0
    %64 = vmatpush.xpose.msra.mxu0 0.0
    %65 = vmatpush.xpose.msra.mxu0 0.0
    %66 = vmatpush.xpose.msra.mxu0 0.0
    %67 = vmatpush.xpose.msra.mxu0 0.0
    %68 = vmatpush.xpose.msra.mxu0 0.0
    %69 = vmatpush.xpose.msra.mxu0 0.0
    %70 = vmatpush.xpose.msra.mxu0 0.0
    %71 = vmatpush.xpose.msra.mxu0 0.0
    %72 = vmatpush.xpose.msra.mxu0 0.0
    %73 = vmatpush.xpose.msra.mxu0 %v56
    %74 = vmatmul.f32.gmra.mxu0 %v53
    %v75 = vpop.f32.mrf.mxu0
    %v76 = vadd.f32 0.0, %v75
    %77 = vdwg.mxu0
    %v78 = vld [vmem:[%s2] sm:$0xff]
    %v79 = vld [vmem:[%s3] sm:$0x1]
    %81 = vset.pattern.permute.xlu0 0
    %82 = vperm.xlu0 %81, %v78
    %v83 = vpop.permute.xlu0 %82
    %v86 = vperm.slane %v79, 0
    %v88 = vadd.f32 %v83, %v86
    %v89 = vmul.f32 %v76, 2.0
    %v90 = vsub.f32 %v88, %v89
    %s91 = smul.u32 0, 8
    %v92 = vlaneseq
    %v93 = vshrl.u32 %v92, 7
    %v94 = vstv %s91
    %v95 = vadd.s32 %v94, %v93
    %s96 = smul.u32 0, 8
    %v97 = vlaneseq
    %v98 = vand.u32 %v97, 127
    %v99 = vstv %s96
    %v100 = vadd.s32 %v99, %v98
    %vm101 = vcmp.eq.s32.totalorder %v95, %v100
    %vm102 = vcmp.lt.s32.totalorder %v95, 8
    %vm103 = vcmp.lt.s32.totalorder %v100, 8
    %vm104 = vmand %vm102, %vm103
    %vm105 = vmxor %vm104, 1
    %vm106 = vmor %vm101, %vm105
    %v107 = vmax.f32 %v90, 0.0
    %v108 = vsel %vm106, 0.0, %v107
    %v109 = vrsqrt.pop %v108
    %v110 = vmul.f32 %v109, %v108
    %v111 = vmul.f32 %v110, %v109
    %v112 = vmul.f32 0.5, %v111
    %v113 = vsub.f32 1.5, %v112
    %v114 = vmul.f32 %v109, %v113
    %v115 = vmul.f32 %v108, %v114
    %vm116 = vcmp.eq.f32.partialorder %v108, inf
    %v117 = vsel %vm116, %v108, %v115
    %vm118 = vcmp.eq.f32.partialorder %v108, 0.0
    %v119 = vand.u32 %v108, 2147483648
    %v120 = vsel %vm118, %v119, %v117
    %v121 = vld [vmem:[#allocation5] sm:$0xff]
    %v122 = vsel %vm104, %v121, 0.0
    %v123 = vsel %vm101, 1, 0
    %v124 = vcvt.s32.f32 %v123
    %v125 = vadd.f32 %v122, %v124
    %v126 = vsel %vm104, %v125, 1.0
    %v127 = vrcp.pop %v126
    %v128 = vmul.f32 %v126, %v127
    %v129 = vsub.f32 1.0, %v128
    %v130 = vmul.f32 %v127, %v129
    %v131 = vadd.f32 %v127, %v130
    %vm132 = vweird.f32 %v126
    %vm133 = vweird.f32 %v127
    %vm134 = vmor %vm132, %vm133
    %v135 = vsel %vm134, %v127, %v131
    %v136 = vand.u32 2147483647, %v126
    %vm137 = vcmp.eq.f32.partialorder %v136, 8.507059e+37
    %v138 = vand.u32 %v126, 2147483648
    %v139 = vor.u32 1.1754944e-38, %v138
    %v140 = vsel %vm137, %v139, %v135
    %v141 = vmul.f32 %v140, %v140
    %v142 = vmul.f32 %v120, %v140
    %vm143 = vcmask 64512
    %v144 = vsel %vm143, %v142, 0.0
    %145 = vadd.xlane.f32.xlu0 %v144
    %v146 = vpop.xlane.xlu0 %145
    %v147 = vrot.slane %v146, 4
    %v148 = vadd.f32 %v146, %v147
    %v149 = vrot.slane %v148, 2
    %v150 = vadd.f32 %v148, %v149
    %v151 = vrot.slane %v150, 1
    %v152 = vadd.f32 %v150, %v151
    %s153 = vtos %v152
    %v154 = vmul.f32 %v108, %v141
    %v155 = vsel %vm143, %v154, 0.0
    %156 = vadd.xlane.f32.xlu0 %v155
    %v157 = vpop.xlane.xlu0 %156
    %v158 = vrot.slane %v157, 4
    %v159 = vadd.f32 %v157, %v158
    %v160 = vrot.slane %v159, 2
    %v161 = vadd.f32 %v159, %v160
    %v162 = vrot.slane %v161, 1
    %v163 = vadd.f32 %v161, %v162
    %s164 = vtos %v163
    %v165 = vmul.f32 %v120, %v122
    %v166 = vmul.f32 %v165, %v141
    %v167 = vsel %vm143, %v166, 0.0
    %168 = vadd.xlane.f32.xlu0 %v167
    %v169 = vpop.xlane.xlu0 %168
    %v170 = vrot.slane %v169, 4
    %v171 = vadd.f32 %v169, %v170
    %v172 = vrot.slane %v171, 2
    %v173 = vadd.f32 %v171, %v172
    %v174 = vrot.slane %v173, 1
    %v175 = vadd.f32 %v173, %v174
    %s176 = vtos %v175
    %v177 = vmul.f32 %v122, %v122
    %v178 = vmul.f32 %v177, %v141
    %v179 = vsel %vm143, %v178, 0.0
    %180 = vadd.xlane.f32.xlu0 %v179
    %v181 = vpop.xlane.xlu0 %180
    %v182 = vrot.slane %v181, 4
    %v183 = vadd.f32 %v181, %v182
    %v184 = vrot.slane %v183, 2
    %v185 = vadd.f32 %v183, %v184
    %v186 = vrot.slane %v185, 1
    %v187 = vadd.f32 %v185, %v186
    %s188 = vtos %v187
    %vm189 = vcmp.eq.s32.totalorder %v93, 0
    %vm190 = vcmp.eq.s32.totalorder %v98, 0
    %vm191 = vmand %vm189, %vm190
    %v192 = vstv %s153
    %v193 = vsel %vm191, %v192, 0.0
    %vm194 = vcmp.eq.s32.totalorder %v98, 1
    %vm195 = vmand %vm189, %vm194
    %v196 = vstv %s164
    %v197 = vsel %vm195, %v196, %v193
    %vm198 = vcmp.eq.s32.totalorder %v98, 2
    %vm199 = vmand %vm189, %vm198
    %v200 = vstv %s176
    %v201 = vsel %vm199, %v200, %v197
    %vm202 = vcmp.eq.s32.totalorder %v98, 3
    %vm203 = vmand %vm189, %vm202
    %v204 = vstv %s188
    %v205 = vsel %vm203, %v204, %v201
    %p206 = scmp.eq.s32.totalorder 0, 0
    // Predicated region
    $region30: #{tpu_custom_call.1} parent=1 // pred_check
      %p207 = pneg %p206
    $region31: #{tpu_custom_call.1} parent=1 // pred_check_branch
      %209 = sbr.rel (%p207) target = $region33
    $region32: #{tpu_custom_call.1} parent=1 // pred_region
      %210 = vst [vmem:[#allocation7] sm:$0xff] %v205
    $region33: #{tpu_custom_call.1} parent=1 // pred_fallthru
      _
    %p211 = scmp.gt.s32.totalorder 0, 0
    // Predicated region
    $region34: #{tpu_custom_call.1} parent=1 // pred_check
      %p212 = pneg %p211
    $region35: #{tpu_custom_call.1} parent=1 // pred_check_branch
      %214 = sbr.rel (%p212) target = $region37
    $region36: #{tpu_custom_call.1} parent=1 // pred_region
      %v215 = vld [vmem:[#allocation7] sm:$0xff]
      %v216 = vadd.f32 %v215, %v205
      %217 = vst [vmem:[#allocation7] sm:$0xff] %v216
    $region37: #{tpu_custom_call.1} parent=1 // pred_fallthru
      _
    // Predicated region
    $region38: #{tpu_custom_call.1} parent=1 // pred_check
      _
    $region39: #{tpu_custom_call.1} parent=1 // pred_check_branch
      %219 = sbr.rel (0) target = $region41
    $region40: #{tpu_custom_call.1} parent=1 // pred_region
      %221 = vsyncadd [#allocation4], 0
      %s223 = sshll.u32 [#allocation7], 4
      %s224 = int_to_ptr.vmem [resolvable:$true] %s223
      %s225 = sshll.u32 %s5, 4
      %s226 = int_to_ptr.hbm [resolvable:$true] %s225
      %228 = dma.vmem_to_hbm [thread:$0]  %s224, 128, %s226, [#allocation4]
    $region41: #{tpu_custom_call.1} parent=1 // pred_fallthru
      _
    // Predicated region
    $region42: #{tpu_custom_call.1} parent=1 // pred_check
      _
    $region43: #{tpu_custom_call.1} parent=1 // pred_check_branch
      %230 = sbr.rel (0) target = $region45
    $region44: #{tpu_custom_call.1} parent=1 // pred_region
      %232 = dma.done [#allocation4], 128
    $region45: #{tpu_custom_call.1} parent=1 // pred_fallthru
      _
    %233 = vsyncpa [#allocation3], 1
    %234 = vsyncpa [#allocation6], 1
    %235 = vsyncpa [#allocation4], 1

</llo_original>
